<compile_context>
chip_gen: v7x
topology: tpu7x:2x2x1
jax: 0.10.0
libtpu: 0.0.40
codegen_flags: <defaults>
</compile_context>

<pallas_src>
import functools

import jax
import jax.numpy as jnp
from jax.experimental import pallas as pl
from jax.experimental.pallas import tpu as pltpu


def _bottleneck_kernel(x_ref, w1_ref, b1_ref, w2_ref, b2_ref, mask_ref, o_ref,
                       *, H, W, KH, KW, Nb, add):
    """One grid step = Nb batch elements.

    x_ref:    (Nb, C1, H*W)       bf16  input, channels on sublanes, spatial on lanes
    w1_ref:   (Cm, C1)            bf16  1x1 conv weights (BN1 scale folded in)
    b1_ref:   (Cm, 1)             f32   folded BN1 shift
    w2_ref:   (C2, KH*KW*Cm)      bf16  3x3 conv weights (BN2 scale folded in),
                                        rows ordered (kh, kw, cm)
    b2_ref:   (C2, 1)             f32   folded BN2 shift
    mask_ref: (KH*KW*Cm, H*W)     f32   0/1 boundary mask for the full im2col slab
    o_ref:    (Nb, C2, H*W)       out dtype
    """
    HW = H * W

    # Hoist weight / bias / mask loads out of the per-image loop.
    w1 = w1_ref[...]
    w2 = w2_ref[...]
    b1 = b1_ref[...]
    b2 = b2_ref[...]
    mask = mask_ref[...]

    for n in range(Nb):                                             # Nb is static & small
        x = x_ref[n]                                                # (C1, HW) bf16

        # ---- cv1: 1x1 conv == one lane-dense MXU matmul, BN shift + SiLU ----
        y1 = jnp.dot(w1, x, preferred_element_type=jnp.float32)     # (Cm, HW) f32
        y1 = y1 + b1
        y1 = y1 * pl.reciprocal(1.0 + jnp.exp(-y1), approx=True)    # SiLU via EUP

        # ---- cv2: 3x3 'same' conv as ONE matmul over an in-register im2col slab ----
        # Taps are lane-rolls of y1, assembled in f32 (tile-aligned 8-row
        # pieces), masked once slab-wide, then cast to bf16 once.
        taps = []
        for kh in range(KH):
            for kw in range(KW):
                off = (kh - KH // 2) * W + (kw - KW // 2)
                taps.append(y1 if off == 0
                            else pltpu.roll(y1, shift=(-off) % HW, axis=1))
        slab = jnp.concatenate(taps, axis=0)                        # (KH*KW*Cm, HW) f32
        slab = (slab * mask).astype(jnp.bfloat16)                   # one mask mul + one cast

        y2 = jnp.dot(w2, slab, preferred_element_type=jnp.float32)  # (C2, HW) f32
        y2 = y2 + b2
        y2 = y2 * pl.reciprocal(1.0 + jnp.exp(-y2), approx=True)    # SiLU via EUP

        if add:                                                     # residual shortcut
            y2 = y2 + x.astype(jnp.float32)

        o_ref[n] = y2.astype(o_ref.dtype)


def _slab_mask(H, W, KH, KW, Cm):
    """(KH*KW*Cm, H*W) f32 0/1 mask implementing zero 'same' padding per tap."""
    hh = jnp.arange(H).reshape(H, 1)
    ww = jnp.arange(W).reshape(1, W)
    pieces = []
    for kh in range(KH):
        for kw in range(KW):
            dh, dw = kh - KH // 2, kw - KW // 2
            valid = ((hh + dh >= 0) & (hh + dh < H) &
                     (ww + dw >= 0) & (ww + dw < W)).reshape(1, H * W)
            pieces.append(jnp.broadcast_to(valid, (Cm, H * W)))
    return jnp.concatenate(pieces, axis=0).astype(jnp.float32)


def bottleneck_forward(x_nchw,
                       w1_oihw, g1, b1, m1, v1,
                       w2_oihw, g2, b2, m2, v2,
                       *, shortcut=True, eps=1e-5,
                       batch_block=None, out_dtype=jnp.float32):
    """Forward of Bottleneck(c1, c2, shortcut, groups=1, e) in eval mode.

    x_nchw:  (N, C1, H, W) f32;  w1: (Cm, C1, 1, 1);  w2: (C2, Cm, 3, 3)
    Returns (N, C2, H, W) out_dtype.
    """
    N, C1, H, W = x_nchw.shape
    Cm, C1w, K1h, K1w = w1_oihw.shape
    C2, Cmw, KH, KW = w2_oihw.shape
    assert C1w == C1 and Cmw == Cm and (K1h, K1w) == (1, 1)
    HW = H * W
    add = bool(shortcut and C1 == C2)

    # Batch-block choice: amortize per-grid-step overhead, but keep >= 2
    # parallel grid steps when possible so v7x's two TensorCores are used.
    if batch_block is None:
        batch_block = 1
        for nb in range(N, 0, -1):
            if N % nb == 0 and N // nb >= 2:
                batch_block = nb
                break
    assert N % batch_block == 0
    Nb = batch_block
    grid = (N // Nb,)

    # ---- glue (weight-sized work only; activations are just reshaped) ----
    x_flat = x_nchw.reshape(N, C1, HW).astype(jnp.bfloat16)          # NCHW -> (N,C,HW), free

    # Fold BN scale into the conv weights (in f32, before the bf16 cast).
    s1 = (g1 / jnp.sqrt(v1 + eps)).astype(jnp.float32)
    t1 = (b1 - m1 * s1).astype(jnp.float32)
    s2 = (g2 / jnp.sqrt(v2 + eps)).astype(jnp.float32)
    t2 = (b2 - m2 * s2).astype(jnp.float32)

    w1_mat = (w1_oihw.reshape(Cm, C1) * s1.reshape(Cm, 1)).astype(jnp.bfloat16)
    # rows ordered (kh, kw, cm) to match the im2col slab built in the kernel
    w2_mat = jnp.transpose(w2_oihw, (0, 2, 3, 1)).reshape(C2, KH * KW * Cm)
    w2_mat = (w2_mat * s2.reshape(C2, 1)).astype(jnp.bfloat16)

    t1 = t1.reshape(Cm, 1)
    t2 = t2.reshape(C2, 1)

    mask = _slab_mask(H, W, KH, KW, Cm)                              # (KH*KW*Cm, HW) f32

    kernel = functools.partial(_bottleneck_kernel, H=H, W=W, KH=KH, KW=KW,
                               Nb=Nb, add=add)

    out_flat = pl.pallas_call(
        kernel,
        out_shape=jax.ShapeDtypeStruct((N, C2, HW), out_dtype),
        grid_spec=pltpu.PrefetchScalarGridSpec(
            num_scalar_prefetch=0,
            grid=grid,
            in_specs=[
                pl.BlockSpec((Nb, C1, HW), lambda n: (n, 0, 0)),
                pl.BlockSpec((Cm, C1), lambda n: (0, 0)),
                pl.BlockSpec((Cm, 1), lambda n: (0, 0)),
                pl.BlockSpec((C2, KH * KW * Cm), lambda n: (0, 0)),
                pl.BlockSpec((C2, 1), lambda n: (0, 0)),
                pl.BlockSpec((KH * KW * Cm, HW), lambda n: (0, 0)),
            ],
            out_specs=pl.BlockSpec((Nb, C2, HW), lambda n: (n, 0, 0)),
        ),
        compiler_params=pltpu.CompilerParams(
            dimension_semantics=("parallel",),
            vmem_limit_bytes=32 * 1024 * 1024,
        ),
    )(x_flat, w1_mat, t1, w2_mat, t2, mask)

    return out_flat.reshape(N, C2, H, W)                             # (N,C,HW) -> NCHW, free


def _bottleneck_reference(x, w1, g1, b1, m1, v1, w2, g2, b2, m2, v2,
                          shortcut=True, eps=1e-5):
    """Pure-JAX f32 reference: Conv+BN(eval)+SiLU twice, plus shortcut."""
    def conv_bn_silu(z, w, gamma, beta, mean, var):
        y = jax.lax.conv_general_dilated(
            z, w, window_strides=(1, 1), padding="SAME",
            dimension_numbers=("NCHW", "OIHW", "NCHW"))
        s = (gamma / jnp.sqrt(var + eps)).reshape(1, -1, 1, 1)
        b = (beta - mean * (gamma / jnp.sqrt(var + eps))).reshape(1, -1, 1, 1)
        y = y * s + b
        return y * jax.nn.sigmoid(y)

    y = conv_bn_silu(x, w1, g1, b1, m1, v1)
    y = conv_bn_silu(y, w2, g2, b2, m2, v2)
    return x + y if (shortcut and x.shape[1] == w2.shape[0]) else y


if __name__ == "__main__":
    # Bottleneck(c1=16, c2=16, shortcut=True, e=0.5) -> _c = 8, on 2x16x16x16 input.
    N, C1, C2, H, W = 2, 16, 16, 16, 16
    Cm = int(C2 * 0.5)
    K = 3

    key = jax.random.PRNGKey(0)
    ks = jax.random.split(key, 12)

    x = jax.random.normal(ks[0], (N, C1, H, W), dtype=jnp.float32)

    w1 = jax.random.normal(ks[1], (Cm, C1, 1, 1), dtype=jnp.float32) * 0.1
    g1 = 1.0 + 0.1 * jax.random.normal(ks[2], (Cm,), dtype=jnp.float32)
    b1 = 0.1 * jax.random.normal(ks[3], (Cm,), dtype=jnp.float32)
    m1 = 0.1 * jax.random.normal(ks[4], (Cm,), dtype=jnp.float32)
    v1 = jax.nn.softplus(jax.random.normal(ks[5], (Cm,), dtype=jnp.float32)) + 0.5

    w2 = jax.random.normal(ks[6], (C2, Cm, K, K), dtype=jnp.float32) * 0.1
    g2 = 1.0 + 0.1 * jax.random.normal(ks[7], (C2,), dtype=jnp.float32)
    b2 = 0.1 * jax.random.normal(ks[8], (C2,), dtype=jnp.float32)
    m2 = 0.1 * jax.random.normal(ks[9], (C2,), dtype=jnp.float32)
    v2 = jax.nn.softplus(jax.random.normal(ks[10], (C2,), dtype=jnp.float32)) + 0.5

    out = bottleneck_forward(x, w1, g1, b1, m1, v1, w2, g2, b2, m2, v2, shortcut=True)
    out = jax.block_until_ready(out)

    ref = _bottleneck_reference(x, w1, g1, b1, m1, v1, w2, g2, b2, m2, v2, shortcut=True)

    assert out.shape == (N, C2, H, W)
    max_err = float(jnp.max(jnp.abs(out - ref)))
    # bf16 inputs/weights on the MXU path + approx reciprocal -> loosened tolerance.
    assert jnp.allclose(out, ref, atol=3e-2, rtol=3e-2), f"mismatch vs reference: {max_err}"

    print("KERNEL_OK")
</pallas_src>

<mosaic_0001>
module attributes {stable_mosaic.version = 11 : i64} {
  func.func @_bottleneck_kernel(%arg0: i32, %arg1: memref<1x16x256xbf16, #tpu.memory_space<vmem>>, %arg2: memref<8x16xbf16, #tpu.memory_space<vmem>>, %arg3: memref<8x1xf32, #tpu.memory_space<vmem>>, %arg4: memref<16x72xbf16, #tpu.memory_space<vmem>>, %arg5: memref<16x1xf32, #tpu.memory_space<vmem>>, %arg6: memref<72x256xf32, #tpu.memory_space<vmem>>, %arg7: memref<1x16x256xf32, #tpu.memory_space<vmem>>) attributes {dimension_semantics = [#tpu.dimension_semantics<parallel>], iteration_bounds = array<i64: 2>, scalar_prefetch = 0 : i64, scratch_operands = 0 : i64, tpu.core_type = #tpu.core_type<tc>, window_params = [{transform_indices = @transform_0, window_bounds = array<i64: 1, 16, 256>}, {pipeline_mode = #tpu.pipeline_mode<synchronous>, transform_indices = @transform_1, window_bounds = array<i64: 8, 16>}, {pipeline_mode = #tpu.pipeline_mode<synchronous>, transform_indices = @transform_2, window_bounds = array<i64: 8, 1>}, {pipeline_mode = #tpu.pipeline_mode<synchronous>, transform_indices = @transform_3, window_bounds = array<i64: 16, 72>}, {pipeline_mode = #tpu.pipeline_mode<synchronous>, transform_indices = @transform_4, window_bounds = array<i64: 16, 1>}, {pipeline_mode = #tpu.pipeline_mode<synchronous>, transform_indices = @transform_5, window_bounds = array<i64: 72, 256>}, {transform_indices = @transform_6, window_bounds = array<i64: 1, 16, 256>}]} {
    %c0 = arith.constant 0 : index
    %c0_0 = arith.constant 0 : index
    %0 = vector.load %arg2[%c0, %c0_0] : memref<8x16xbf16, #tpu.memory_space<vmem>>, vector<8x16xbf16>
    %c0_1 = arith.constant 0 : index
    %c0_2 = arith.constant 0 : index
    %1 = vector.load %arg4[%c0_1, %c0_2] : memref<16x72xbf16, #tpu.memory_space<vmem>>, vector<16x72xbf16>
    %c0_3 = arith.constant 0 : index
    %c0_4 = arith.constant 0 : index
    %2 = vector.load %arg3[%c0_3, %c0_4] : memref<8x1xf32, #tpu.memory_space<vmem>>, vector<8x1xf32>
    %c0_5 = arith.constant 0 : index
    %c0_6 = arith.constant 0 : index
    %3 = vector.load %arg5[%c0_5, %c0_6] : memref<16x1xf32, #tpu.memory_space<vmem>>, vector<16x1xf32>
    %c0_7 = arith.constant 0 : index
    %c0_8 = arith.constant 0 : index
    %4 = vector.load %arg6[%c0_7, %c0_8] : memref<72x256xf32, #tpu.memory_space<vmem>>, vector<72x256xf32>
    %c0_9 = arith.constant 0 : index
    %c0_10 = arith.constant 0 : index
    %c0_11 = arith.constant 0 : index
    %5 = vector.load %arg1[%c0_9, %c0_10, %c0_11] : memref<1x16x256xbf16, #tpu.memory_space<vmem>>, vector<1x16x256xbf16>
    %6 = vector.shape_cast %5 : vector<1x16x256xbf16> to vector<16x256xbf16>
    %cst = arith.constant dense<0.000000e+00> : vector<8x256xf32>
    %7 = tpu.matmul %0, %6, %cst {dimension_numbers = #tpu.dot_dimension_numbers<[1], [0], [0], [1], [0, 0, 1, 1], [], []>} : vector<8x16xbf16>, vector<16x256xbf16>, vector<8x256xf32> -> vector<8x256xf32>
    %8 = vector.broadcast %2 : vector<8x1xf32> to vector<8x256xf32>
    %9 = arith.addf %7, %8 : vector<8x256xf32>
    %cst_12 = arith.constant 0.000000e+00 : f32
    %10 = vector.broadcast %cst_12 : f32 to vector<8x256xf32>
    %11 = arith.subf %10, %9 : vector<8x256xf32>
    %12 = math.exp %11 : vector<8x256xf32>
    %cst_13 = arith.constant 1.000000e+00 : f32
    %13 = vector.broadcast %cst_13 : f32 to vector<8x256xf32>
    %14 = arith.addf %13, %12 : vector<8x256xf32>
    %15 = tpu.reciprocal %14 {approx = true} : vector<8x256xf32> -> vector<8x256xf32>
    %16 = arith.mulf %9, %15 : vector<8x256xf32>
    %c17_i32 = arith.constant 17 : i32
    %17 = tpu.dynamic_rotate %16 by %c17_i32 dim 1 : vector<8x256xf32>, i32 -> vector<8x256xf32>
    %c16_i32 = arith.constant 16 : i32
    %18 = tpu.dynamic_rotate %16 by %c16_i32 dim 1 : vector<8x256xf32>, i32 -> vector<8x256xf32>
    %c15_i32 = arith.constant 15 : i32
    %19 = tpu.dynamic_rotate %16 by %c15_i32 dim 1 : vector<8x256xf32>, i32 -> vector<8x256xf32>
    %c1_i32 = arith.constant 1 : i32
    %20 = tpu.dynamic_rotate %16 by %c1_i32 dim 1 : vector<8x256xf32>, i32 -> vector<8x256xf32>
    %c255_i32 = arith.constant 255 : i32
    %21 = tpu.dynamic_rotate %16 by %c255_i32 dim 1 : vector<8x256xf32>, i32 -> vector<8x256xf32>
    %c241_i32 = arith.constant 241 : i32
    %22 = tpu.dynamic_rotate %16 by %c241_i32 dim 1 : vector<8x256xf32>, i32 -> vector<8x256xf32>
    %c240_i32 = arith.constant 240 : i32
    %23 = tpu.dynamic_rotate %16 by %c240_i32 dim 1 : vector<8x256xf32>, i32 -> vector<8x256xf32>
    %c239_i32 = arith.constant 239 : i32
    %24 = tpu.dynamic_rotate %16 by %c239_i32 dim 1 : vector<8x256xf32>, i32 -> vector<8x256xf32>
    %25 = tpu.concatenate %17, %18, %19, %20, %16, %21, %22, %23, %24 in 0 : vector<8x256xf32>, vector<8x256xf32>, vector<8x256xf32>, vector<8x256xf32>, vector<8x256xf32>, vector<8x256xf32>, vector<8x256xf32>, vector<8x256xf32>, vector<8x256xf32> -> vector<72x256xf32>
    %26 = arith.mulf %25, %4 : vector<72x256xf32>
    %27 = arith.truncf %26 : vector<72x256xf32> to vector<72x256xbf16>
    %cst_14 = arith.constant dense<0.000000e+00> : vector<16x256xf32>
    %28 = tpu.matmul %1, %27, %cst_14 {dimension_numbers = #tpu.dot_dimension_numbers<[1], [0], [0], [1], [0, 0, 1, 1], [], []>} : vector<16x72xbf16>, vector<72x256xbf16>, vector<16x256xf32> -> vector<16x256xf32>
    %29 = vector.broadcast %3 : vector<16x1xf32> to vector<16x256xf32>
    %30 = arith.addf %28, %29 : vector<16x256xf32>
    %cst_15 = arith.constant 0.000000e+00 : f32
    %31 = vector.broadcast %cst_15 : f32 to vector<16x256xf32>
    %32 = arith.subf %31, %30 : vector<16x256xf32>
    %33 = math.exp %32 : vector<16x256xf32>
    %cst_16 = arith.constant 1.000000e+00 : f32
    %34 = vector.broadcast %cst_16 : f32 to vector<16x256xf32>
    %35 = arith.addf %34, %33 : vector<16x256xf32>
    %36 = tpu.reciprocal %35 {approx = true} : vector<16x256xf32> -> vector<16x256xf32>
    %37 = arith.mulf %30, %36 : vector<16x256xf32>
    %38 = arith.extf %6 : vector<16x256xbf16> to vector<16x256xf32>
    %39 = arith.addf %37, %38 : vector<16x256xf32>
    %c0_17 = arith.constant 0 : index
    %c0_18 = arith.constant 0 : index
    %c0_19 = arith.constant 0 : index
    %40 = vector.load %arg7[%c0_17, %c0_18, %c0_19] : memref<1x16x256xf32, #tpu.memory_space<vmem>>, vector<1x16x256xf32>
    %41 = vector.shape_cast %40 : vector<1x16x256xf32> to vector<16x256xf32>
    %42 = vector.shape_cast %39 : vector<16x256xf32> to vector<1x16x256xf32>
    tpu.vector_store %arg7[%c0_17, %c0_18, %c0_19], %42 {strides = array<i32>} : memref<1x16x256xf32, #tpu.memory_space<vmem>>, vector<1x16x256xf32>,
    return
  }
  func.func @transform_0(%arg0: i32) -> (i32, i32, i32) {
    %c0_i32 = arith.constant 0 : i32
    %c0_i32_0 = arith.constant 0 : i32
    %c0_i32_1 = arith.constant 0 : i32
    return %arg0, %c0_i32, %c0_i32_0 : i32, i32, i32
  }
  func.func @transform_1(%arg0: i32) -> (i32, i32) {
    %c0_i32 = arith.constant 0 : i32
    %c0_i32_0 = arith.constant 0 : i32
    %c0_i32_1 = arith.constant 0 : i32
    return %c0_i32, %c0_i32_0 : i32, i32
  }
  func.func @transform_2(%arg0: i32) -> (i32, i32) {
    %c0_i32 = arith.constant 0 : i32
    %c0_i32_0 = arith.constant 0 : i32
    %c0_i32_1 = arith.constant 0 : i32
    return %c0_i32, %c0_i32_0 : i32, i32
  }
  func.func @transform_3(%arg0: i32) -> (i32, i32) {
    %c0_i32 = arith.constant 0 : i32
    %c0_i32_0 = arith.constant 0 : i32
    %c0_i32_1 = arith.constant 0 : i32
    return %c0_i32, %c0_i32_0 : i32, i32
  }
  func.func @transform_4(%arg0: i32) -> (i32, i32) {
    %c0_i32 = arith.constant 0 : i32
    %c0_i32_0 = arith.constant 0 : i32
    %c0_i32_1 = arith.constant 0 : i32
    return %c0_i32, %c0_i32_0 : i32, i32
  }
  func.func @transform_5(%arg0: i32) -> (i32, i32) {
    %c0_i32 = arith.constant 0 : i32
    %c0_i32_0 = arith.constant 0 : i32
    %c0_i32_1 = arith.constant 0 : i32
    return %c0_i32, %c0_i32_0 : i32, i32
  }
  func.func @transform_6(%arg0: i32) -> (i32, i32, i32) {
    %c0_i32 = arith.constant 0 : i32
    %c0_i32_0 = arith.constant 0 : i32
    %c0_i32_1 = arith.constant 0 : i32
    return %arg0, %c0_i32, %c0_i32_0 : i32, i32, i32
  }
}

</mosaic_0001>

<llo_original>
// kernel: tpu_custom_call.1
$region0: #{tpu_custom_call.1}
  #allocation0 [shape = 'u32[]', space=smem, size = 0x4, offset = 0x4, fixed_abs, tag = 'smem constant byte address 0x4 - core index']
  #allocation1 [shape = 'u32[144,128]{1,0:T(1,128)}', space=vmem, size = 0x12000, scoped, tag = 'internal scratch']
  %s0 = inlined_call_operand.hbm [shape: bf16[2,16,256], index: 0, kind: input, shape index: {}]
  %s1 = inlined_call_operand.vmem [shape: bf16[8,16], index: 1, kind: input, shape index: {}]
  %s2 = inlined_call_operand.vmem [shape: f32[8,1], index: 2, kind: input, shape index: {}]
  %s3 = inlined_call_operand.vmem [shape: bf16[16,72], index: 3, kind: input, shape index: {}]
  %s4 = inlined_call_operand.vmem [shape: f32[16,1], index: 4, kind: input, shape index: {}]
  %s5 = inlined_call_operand.hbm [shape: f32[72,256], index: 5, kind: input, shape index: {}]
  %s6 = inlined_call_operand.hbm [shape: f32[2,16,256], index: 6, kind: output, shape index: {}]
  %s7 = sld [smem:[#allocation0]]
  $region65: #{tpu_custom_call.1} parent=0
    _
  %s9 = ssub.s32 1, %s7
  %s10 = scalar_select 0, %s9, %s7
  $region1: #{tpu_custom_call.1} parent=0
    #allocation2 [shape = 'u8[16384]{0}', space=vmem, size = 0x4000, scoped, tag = 'input window, operand 0']
    #allocation3 [shape = 's32[2]{0}', space=sflag, size = 0x8, scoped, tag = 'scoped memory for tpu_custom_call.1']
    #allocation4 [shape = 's32[2]{0}', space=sflag, size = 0x8, scoped, tag = 'scoped memory for tpu_custom_call.1']
    #allocation5 [shape = 'u8[73728]{0}', space=vmem, size = 0x12000, scoped, tag = 'input window, operand 5, single buffered']
    #allocation6 [shape = 's32[1]{0}', space=sflag, size = 0x4, scoped, tag = 'scoped memory for tpu_custom_call.1']
    #allocation7 [shape = 'u8[32768]{0}', space=vmem, size = 0x8000, scoped, tag = 'output window, operand 0']
    %11 = vsyncpa [#allocation3], 0
    %s12 = scalar_lea.sflag [#allocation3], 1
    %13 = vsyncpa %s12, 0
    %14 = vsyncpa [#allocation6], 0
    %15 = vsyncpa [#allocation4], 0
    %s16 = scalar_lea.sflag [#allocation4], 1
    %17 = vsyncpa %s16, 0
    loop: start=0, step=1, limit=4
    $region2: #{tpu_custom_call.1} parent=1 // loop_pre_header
      _
    $region3: #{tpu_custom_call.1} parent=1 // loop_header
      %s19 = sphi 0, %s23
      %p20 = scmp.ge.s32.totalorder %s19, 4
      %s29 = sphi 0, %s31
      %s32 = sphi 0, %s29
      %s33 = sphi 0, %s32
      %s49 = sphi 0, %s33
      %s53 = sphi 0, %s53
      %s55 = sphi 0, %s53
      %s56 = sphi 0, %s55
      %s70 = sphi 0, %s56
      %s74 = sphi 0, %s74
      %s76 = sphi 0, %s74
      %s77 = sphi 0, %s76
      %s91 = sphi 0, %s77
      %s95 = sphi 0, %s95
      %s97 = sphi 0, %s95
      %s98 = sphi 0, %s97
      %s112 = sphi 0, %s98
      %s116 = sphi 0, %s116
      %s118 = sphi 0, %s116
      %s119 = sphi 0, %s118
      %s133 = sphi 0, %s119
      %s137 = sphi 0, %s137
      %s139 = sphi 0, %s137
      %s140 = sphi 0, %s139
      %s154 = sphi 0, %s140
      %s160 = sphi 0, %s162
      %s163 = sphi 0, %s160
      %s164 = sphi 0, %s163
      %s180 = sphi 0, %s164
    $region4: #{tpu_custom_call.1} parent=1 // loop_header_branch
      %22 = sbr.rel (%p20) target = $region8
    $region5: #{tpu_custom_call.1} parent=1 // loop_body
      %s24 = ssub.s32 %s19, 1
      %s25 = ssub.s32 %s19, 2
      %s26 = sadd.s32 %s19, 1
      %s27 = ssub.s32 %s19, %s26
      %p28 = scmp.eq.s32.totalorder %s27, 0
      %s30 = sadd.s32 %s29, 1
      %s31 = scalar_select %p28, %s29, %s30
      %p34 = pneg %p28
      %p35 = scmp.eq.s32.totalorder %s19, 1
      %p36 = por %p34, %p35
      %p37 = scmp.ne.s32.totalorder %s29, %s32
      %p38 = scmp.eq.s32.totalorder %s19, 0
      %p39 = por %p37, %p38
      %p40 = scmp.ne.s32.totalorder %s29, %s32
      %p41 = scmp.eq.s32.totalorder %s24, 1
      %p42 = por %p40, %p41
      %p43 = scmp.ne.s32.totalorder %s32, %s33
      %p44 = scmp.eq.s32.totalorder %s24, 0
      %p45 = por %p43, %p44
      %p46 = scmp.ne.s32.totalorder %s32, %s33
      %p47 = scmp.eq.s32.totalorder %s25, 1
      %p48 = por %p46, %p47
      %p50 = scmp.ne.s32.totalorder %s33, %s49
      %p51 = scmp.eq.s32.totalorder %s25, 0
      %p52 = por %p50, %p51
      %s54 = sadd.s32 %s53, 1
      %p57 = scmp.eq.s32.totalorder %s19, 1
      %p58 = scmp.ne.s32.totalorder %s53, %s55
      %p59 = scmp.eq.s32.totalorder %s19, 0
      %p60 = por %p58, %p59
      %p61 = scmp.ne.s32.totalorder %s53, %s55
      %p62 = scmp.eq.s32.totalorder %s24, 1
      %p63 = por %p61, %p62
      %p64 = scmp.ne.s32.totalorder %s55, %s56
      %p65 = scmp.eq.s32.totalorder %s24, 0
      %p66 = por %p64, %p65
      %p67 = scmp.ne.s32.totalorder %s55, %s56
      %p68 = scmp.eq.s32.totalorder %s25, 1
      %p69 = por %p67, %p68
      %p71 = scmp.ne.s32.totalorder %s56, %s70
      %p72 = scmp.eq.s32.totalorder %s25, 0
      %p73 = por %p71, %p72
      %s75 = sadd.s32 %s74, 1
      %p78 = scmp.eq.s32.totalorder %s19, 1
      %p79 = scmp.ne.s32.totalorder %s74, %s76
      %p80 = scmp.eq.s32.totalorder %s19, 0
      %p81 = por %p79, %p80
      %p82 = scmp.ne.s32.totalorder %s74, %s76
      %p83 = scmp.eq.s32.totalorder %s24, 1
      %p84 = por %p82, %p83
      %p85 = scmp.ne.s32.totalorder %s76, %s77
      %p86 = scmp.eq.s32.totalorder %s24, 0
      %p87 = por %p85, %p86
      %p88 = scmp.ne.s32.totalorder %s76, %s77
      %p89 = scmp.eq.s32.totalorder %s25, 1
      %p90 = por %p88, %p89
      %p92 = scmp.ne.s32.totalorder %s77, %s91
      %p93 = scmp.eq.s32.totalorder %s25, 0
      %p94 = por %p92, %p93
      %s96 = sadd.s32 %s95, 1
      %p99 = scmp.eq.s32.totalorder %s19, 1
      %p100 = scmp.ne.s32.totalorder %s95, %s97
      %p101 = scmp.eq.s32.totalorder %s19, 0
      %p102 = por %p100, %p101
      %p103 = scmp.ne.s32.totalorder %s95, %s97
      %p104 = scmp.eq.s32.totalorder %s24, 1
      %p105 = por %p103, %p104
      %p106 = scmp.ne.s32.totalorder %s97, %s98
      %p107 = scmp.eq.s32.totalorder %s24, 0
      %p108 = por %p106, %p107
      %p109 = scmp.ne.s32.totalorder %s97, %s98
      %p110 = scmp.eq.s32.totalorder %s25, 1
      %p111 = por %p109, %p110
      %p113 = scmp.ne.s32.totalorder %s98, %s112
      %p114 = scmp.eq.s32.totalorder %s25, 0
      %p115 = por %p113, %p114
      %s117 = sadd.s32 %s116, 1
      %p120 = scmp.eq.s32.totalorder %s19, 1
      %p121 = scmp.ne.s32.totalorder %s116, %s118
      %p122 = scmp.eq.s32.totalorder %s19, 0
      %p123 = por %p121, %p122
      %p124 = scmp.ne.s32.totalorder %s116, %s118
      %p125 = scmp.eq.s32.totalorder %s24, 1
      %p126 = por %p124, %p125
      %p127 = scmp.ne.s32.totalorder %s118, %s119
      %p128 = scmp.eq.s32.totalorder %s24, 0
      %p129 = por %p127, %p128
      %p130 = scmp.ne.s32.totalorder %s118, %s119
      %p131 = scmp.eq.s32.totalorder %s25, 1
      %p132 = por %p130, %p131
      %p134 = scmp.ne.s32.totalorder %s119, %s133
      %p135 = scmp.eq.s32.totalorder %s25, 0
      %p136 = por %p134, %p135
      %s138 = sadd.s32 %s137, 1
      %p141 = scmp.eq.s32.totalorder %s19, 1
      %p142 = scmp.ne.s32.totalorder %s137, %s139
      %p143 = scmp.eq.s32.totalorder %s19, 0
      %p144 = por %p142, %p143
      %p145 = scmp.ne.s32.totalorder %s137, %s139
      %p146 = scmp.eq.s32.totalorder %s24, 1
      %p147 = por %p145, %p146
      %p148 = scmp.ne.s32.totalorder %s139, %s140
      %p149 = scmp.eq.s32.totalorder %s24, 0
      %p150 = por %p148, %p149
      %p151 = scmp.ne.s32.totalorder %s139, %s140
      %p152 = scmp.eq.s32.totalorder %s25, 1
      %p153 = por %p151, %p152
      %p155 = scmp.ne.s32.totalorder %s140, %s154
      %p156 = scmp.eq.s32.totalorder %s25, 0
      %p157 = por %p155, %p156
      %s158 = ssub.s32 %s19, %s26
      %p159 = scmp.eq.s32.totalorder %s158, 0
      %s161 = sadd.s32 %s160, 1
      %s162 = scalar_select %p159, %s160, %s161
      %p165 = pneg %p159
      %p166 = scmp.eq.s32.totalorder %s19, 1
      %p167 = por %p165, %p166
      %p168 = scmp.ne.s32.totalorder %s160, %s163
      %p169 = scmp.eq.s32.totalorder %s19, 0
      %p170 = por %p168, %p169
      %p171 = scmp.ne.s32.totalorder %s160, %s163
      %p172 = scmp.eq.s32.totalorder %s24, 1
      %p173 = por %p171, %p172
      %p174 = scmp.ne.s32.totalorder %s163, %s164
      %p175 = scmp.eq.s32.totalorder %s24, 0
      %p176 = por %p174, %p175
      %p177 = scmp.ne.s32.totalorder %s163, %s164
      %p178 = scmp.eq.s32.totalorder %s25, 1
      %p179 = por %p177, %p178
      %p181 = scmp.ne.s32.totalorder %s164, %s180
      %p182 = scmp.eq.s32.totalorder %s25, 0
      %p183 = por %p181, %p182
      %p184 = scmp.le.s32.totalorder 1, %s19
      %p185 = scmp.lt.s32.totalorder %s19, 3
      %p186 = pnand %p184, %p185
      %p187 = pneg %p186
      // Predicated region
      $region9: #{tpu_custom_call.1} parent=5 // pred_check
        _
      $region10: #{tpu_custom_call.1} parent=5 // pred_check_branch
        %189 = sbr.rel (%p186) target = $region12
      $region11: #{tpu_custom_call.1} parent=5 // pred_region
        %s190 = ssub.s32 %s19, 1
        // Predicated region
        $region13: #{tpu_custom_call.1} parent=11 // pred_check
          %p191 = pneg %p66
        $region14: #{tpu_custom_call.1} parent=11 // pred_check_branch
          %193 = sbr.rel (%p191) target = $region16
        $region15: #{tpu_custom_call.1} parent=11 // pred_region
          _
        $region16: #{tpu_custom_call.1} parent=11 // pred_fallthru
          _
        // Predicated region
        $region17: #{tpu_custom_call.1} parent=11 // pred_check
          %p194 = pneg %p87
        $region18: #{tpu_custom_call.1} parent=11 // pred_check_branch
          %196 = sbr.rel (%p194) target = $region20
        $region19: #{tpu_custom_call.1} parent=11 // pred_region
          _
        $region20: #{tpu_custom_call.1} parent=11 // pred_fallthru
          _
        // Predicated region
        $region21: #{tpu_custom_call.1} parent=11 // pred_check
          %p197 = pneg %p108
        $region22: #{tpu_custom_call.1} parent=11 // pred_check_branch
          %199 = sbr.rel (%p197) target = $region24
        $region23: #{tpu_custom_call.1} parent=11 // pred_region
          _
        $region24: #{tpu_custom_call.1} parent=11 // pred_fallthru
          _
        // Predicated region
        $region25: #{tpu_custom_call.1} parent=11 // pred_check
          %p200 = pneg %p129
        $region26: #{tpu_custom_call.1} parent=11 // pred_check_branch
          %202 = sbr.rel (%p200) target = $region28
        $region27: #{tpu_custom_call.1} parent=11 // pred_region
          _
        $region28: #{tpu_custom_call.1} parent=11 // pred_fallthru
          _
        // Predicated region
        $region29: #{tpu_custom_call.1} parent=11 // pred_check
          %p203 = pneg %p150
        $region30: #{tpu_custom_call.1} parent=11 // pred_check_branch
          %205 = sbr.rel (%p203) target = $region32
        $region31: #{tpu_custom_call.1} parent=11 // pred_region
          %s207 = ssub.s32 2304, 2304
          %208 = vsyncadd [#allocation6], %s207
          %s209 = sshll.u32 [#allocation5], 4
          %s210 = int_to_ptr.vmem [resolvable:$true] %s209
          %215 = dma.hbm_to_vmem [thread:$0]  %s5, 2304, %s210, [#allocation6], 256, 256, 16
        $region32: #{tpu_custom_call.1} parent=11 // pred_fallthru
          _
      $region12: #{tpu_custom_call.1} parent=5 // pred_fallthru
        _
      %p216 = scmp.lt.s32.totalorder %s19, 2
      // Predicated region
      $region33: #{tpu_custom_call.1} parent=5 // pred_check
        %p217 = pneg %p216
      $region34: #{tpu_custom_call.1} parent=5 // pred_check_branch
        %219 = sbr.rel (%p217) target = $region36
      $region35: #{tpu_custom_call.1} parent=5 // pred_region
        // Predicated region
        $region37: #{tpu_custom_call.1} parent=35 // pred_check
          %p220 = pneg %p39
        $region38: #{tpu_custom_call.1} parent=35 // pred_check_branch
          %222 = sbr.rel (%p220) target = $region40
        $region39: #{tpu_custom_call.1} parent=35 // pred_region
          %s223 = sand.u32 %s29, 1
          %s224 = scalar_lea.sflag [#allocation3], %s223
          %s225 = sand.u32 %s29, 1
          %s226 = smul.addr %s225, 16
          %s227 = scalar_lea.vmem [#allocation2], %s226
          %s229 = ssub.s32 256, 256
          %230 = vsyncadd %s224, %s229
          %s231 = smul.addr %s19, 4
          %s232 = smul.addr %s231, 64
          %s233 = scalar_lea.hbm %s0, %s232
          %s234 = sshll.u32 %s227, 4
          %s235 = int_to_ptr.vmem [resolvable:$true] %s234
          %240 = dma.hbm_to_vmem [thread:$0]  %s233, 256, %s235, %s224, 128, 128, 8
        $region40: #{tpu_custom_call.1} parent=35 // pred_fallthru
          _
      $region36: #{tpu_custom_call.1} parent=5 // pred_fallthru
        _
      %p241 = scmp.le.s32.totalorder 1, %s19
      %p242 = scmp.lt.s32.totalorder %s19, 3
      %p243 = pnand %p241, %p242
      %p244 = pneg %p243
      // Predicated region
      $region41: #{tpu_custom_call.1} parent=5 // pred_check
        _
      $region42: #{tpu_custom_call.1} parent=5 // pred_check_branch
        %246 = sbr.rel (%p243) target = $region44
      $region43: #{tpu_custom_call.1} parent=5 // pred_region
        %s247 = ssub.s32 %s19, 1
        %s248 = sand.u32 %s32, 1
        %s249 = scalar_lea.sflag [#allocation3], %s248
        %s250 = sand.u32 %s32, 1
        %s251 = smul.addr %s250, 16
        %s252 = scalar_lea.vmem [#allocation2], %s251
        // Predicated region
        $region45: #{tpu_custom_call.1} parent=43 // pred_check
          %p253 = pneg %p45
        $region46: #{tpu_custom_call.1} parent=43 // pred_check_branch
          %255 = sbr.rel (%p253) target = $region48
        $region47: #{tpu_custom_call.1} parent=43 // pred_region
          %256 = dma.done %s249, 256
        $region48: #{tpu_custom_call.1} parent=43 // pred_fallthru
          _
        // Predicated region
        $region49: #{tpu_custom_call.1} parent=43 // pred_check
          %p257 = pneg %p150
        $region50: #{tpu_custom_call.1} parent=43 // pred_check_branch
          %259 = sbr.rel (%p257) target = $region52
        $region51: #{tpu_custom_call.1} parent=43 // pred_region
          %260 = dma.done [#allocation6], 2304
        $region52: #{tpu_custom_call.1} parent=43 // pred_fallthru
          _
        %s261 = sand.u32 %s32, 1
        %s262 = scalar_lea.sflag [#allocation3], %s261
        %s263 = sand.u32 %s32, 1
        %s264 = smul.addr %s263, 16
        %s265 = scalar_lea.vmem [#allocation2], %s264
        %p266 = pneg %p45
        %p267 = pneg %p42
        %p268 = pneg %p66
        %p269 = pneg %p63
        %p270 = pneg %p87
        %p271 = pneg %p84
        %p272 = pneg %p108
        %p273 = pneg %p105
        %p274 = pneg %p129
        %p275 = pneg %p126
        %p276 = pneg %p150
        %p277 = pneg %p147
        %p278 = pneg %p176
        %p279 = pneg %p173
        %s280 = sand.u32 %s163, 1
        %s281 = scalar_lea.sflag [#allocation4], %s280
        %s282 = sand.u32 %s163, 1
        %s283 = smul.addr %s282, 32
        %s284 = scalar_lea.vmem [#allocation7], %s283
        %v286 = vld [vmem:[%s1] sm:$0xf]
        %v287 = vld [vmem:[%s3] sm:$0xf]
        %v288 = vld [vmem:[%s3 + $0x4] sm:$0xf]
        %v289 = vld [vmem:[%s2] sm:$0xff]
        %v290 = vld [vmem:[%s4] sm:$0xff]
        %v291 = vld [vmem:[%s4 + $0x8] sm:$0xff]
        %v292 = vld [vmem:[#allocation5] sm:$0xff]
        %v293 = vld [vmem:[#allocation5 + $0x8] sm:$0xff]
        %v294 = vld [vmem:[#allocation5 + $0x10] sm:$0xff]
        %v295 = vld [vmem:[#allocation5 + $0x18] sm:$0xff]
        %v296 = vld [vmem:[#allocation5 + $0x20] sm:$0xff]
        %v297 = vld [vmem:[#allocation5 + $0x28] sm:$0xff]
        %v298 = vld [vmem:[#allocation5 + $0x30] sm:$0xff]
        %v299 = vld [vmem:[#allocation5 + $0x38] sm:$0xff]
        %v300 = vld [vmem:[#allocation5 + $0x40] sm:$0xff]
        %v301 = vld [vmem:[#allocation5 + $0x48] sm:$0xff]
        %v302 = vld [vmem:[#allocation5 + $0x50] sm:$0xff]
        %v303 = vld [vmem:[#allocation5 + $0x58] sm:$0xff]
        %v304 = vld [vmem:[#allocation5 + $0x60] sm:$0xff]
        %v305 = vld [vmem:[#allocation5 + $0x68] sm:$0xff]
        %v306 = vld [vmem:[#allocation5 + $0x70] sm:$0xff]
        %v307 = vld [vmem:[#allocation5 + $0x78] sm:$0xff]
        %v308 = vld [vmem:[#allocation5 + $0x80] sm:$0xff]
        %v309 = vld [vmem:[#allocation5 + $0x88] sm:$0xff]
        %v310 = vld [vmem:[%s252] sm:$0xff]
        %v311 = vld [vmem:[%s252 + $0x8] sm:$0xff]
        %313 = vset.pattern.permute.xlu0 0
        %314 = vperm.xlu0 %313, %v289
        %v315 = vpop.permute.xlu0 %314
        %v319 = vunpack.c.l.b16 %v310
        %v320 = vunpack.c.h.b16 %v310
        %v321 = vunpack.c.l.b16 %v311
        %v322 = vunpack.c.h.b16 %v311
        %v323 = vpack.c.b16 %v321, %v319
        %v324 = vpack.c.b16 %v322, %v320
        %vm327 = vcmask 130048
        %v329 = vsel %vm327, %v286, 0
        %331 = vmatprep.subr.bf16.mxu0 %v324
        %332 = vmatpush1.bf16.msra.mxu0 %v323
        %333 = vmatprep.subr.bf16.mxu0 0
        %334 = vmatpush1.bf16.msra.mxu0 0
        %335 = vmatprep.subr.bf16.mxu0 0
        %336 = vmatpush1.bf16.msra.mxu0 0
        %337 = vmatprep.subr.bf16.mxu0 0
        %338 = vmatpush1.bf16.msra.mxu0 0
        %339 = vmatprep.subr.bf16.mxu0 0
        %340 = vmatpush1.bf16.msra.mxu0 0
        %341 = vmatprep.subr.bf16.mxu0 0
        %342 = vmatpush1.bf16.msra.mxu0 0
        %343 = vmatprep.subr.bf16.mxu0 0
        %344 = vmatpush1.bf16.msra.mxu0 0
        %345 = vmatprep.subr.bf16.mxu0 0
        %346 = vmatpush1.bf16.msra.mxu0 0
        %347 = vmatprep.subr.bf16.mxu0 0
        %348 = vmatpush1.bf16.msra.mxu0 0
        %349 = vmatprep.subr.bf16.mxu0 0
        %350 = vmatpush1.bf16.msra.mxu0 0
        %351 = vmatprep.subr.bf16.mxu0 0
        %352 = vmatpush1.bf16.msra.mxu0 0
        %353 = vmatprep.subr.bf16.mxu0 0
        %354 = vmatpush1.bf16.msra.mxu0 0
        %355 = vmatprep.subr.bf16.mxu0 0
        %356 = vmatpush1.bf16.msra.mxu0 0
        %357 = vmatprep.subr.bf16.mxu0 0
        %358 = vmatpush1.bf16.msra.mxu0 0
        %359 = vmatprep.subr.bf16.mxu0 0
        %360 = vmatpush1.bf16.msra.mxu0 0
        %361 = vmatprep.subr.bf16.mxu0 0
        %362 = vmatpush1.bf16.msra.mxu0 0
        %363 = vmatprep.mubr.bf16.mxu0 0
        %364 = vmatmul.mubr.bf16.gmra.mrb[0].mxu0 %v329
        %v365 = vpop.f32.mrb[0].mxu0
        %v366 = vadd.f32 %v315, %v365
        %v367 = vpop.f32.mrb[0].mxu0
        %v368 = vadd.f32 %v315, %v367
        %v369 = vpop.f32.mrb[0].mxu0
        %v370 = vpop.f32.mrb[0].mxu0
        %371 = vdwg.mxu0
        %v372 = vsub.f32 0.0, %v366
        %v373 = vsub.f32 0.0, %v368
        %v374 = vmul.f32 %v372, 1.442695
        %v375 = vpow.pop %v374
        %v376 = vmul.f32 %v373, 1.442695
        %v377 = vpow.pop %v376
        %v378 = vadd.f32 %v375, 1.0
        %v379 = vadd.f32 %v377, 1.0
        %v380 = vrcp.pop %v378
        %v381 = vrcp.pop %v379
        %v382 = vmul.f32 %v366, %v380
        %v383 = vmul.f32 %v368, %v381
        %384 = vrot.lane.b32.xlu0 %v382, 17
        %v385 = vpop.permute.xlu0 %384
        %386 = vrot.lane.b32.xlu0 %v383, 17
        %v387 = vpop.permute.xlu0 %386
        %v388 = vlaneseq
        %v389 = vand.u32 %v388, 127
        %vm390 = vcmp.lt.s32.totalorder %v389, 17
        %v391 = vsel %vm390, %v385, %v387
        %v392 = vsel %vm390, %v387, %v385
        %393 = vrot.lane.b32.xlu0 %v382, 16
        %v394 = vpop.permute.xlu0 %393
        %395 = vrot.lane.b32.xlu0 %v383, 16
        %v396 = vpop.permute.xlu0 %395
        %vm397 = vcmp.lt.s32.totalorder %v389, 16
        %v398 = vsel %vm397, %v394, %v396
        %v399 = vsel %vm397, %v396, %v394
        %400 = vrot.lane.b32.xlu0 %v382, 15
        %v401 = vpop.permute.xlu0 %400
        %402 = vrot.lane.b32.xlu0 %v383, 15
        %v403 = vpop.permute.xlu0 %402
        %vm404 = vcmp.lt.s32.totalorder %v389, 15
        %v405 = vsel %vm404, %v401, %v403
        %v406 = vsel %vm404, %v403, %v401
        %407 = vrot.lane.b32.xlu0 %v382, 1
        %v408 = vpop.permute.xlu0 %407
        %409 = vrot.lane.b32.xlu0 %v383, 1
        %v410 = vpop.permute.xlu0 %409
        %vm411 = vcmp.lt.s32.totalorder %v389, 1
        %v412 = vsel %vm411, %v408, %v410
        %v413 = vsel %vm411, %v410, %v408
        %414 = vrot.lane.b32.xlu0 %v382, 127
        %v415 = vpop.permute.xlu0 %414
        %416 = vrot.lane.b32.xlu0 %v383, 127
        %v417 = vpop.permute.xlu0 %416
        %vm418 = vcmp.lt.s32.totalorder %v389, 127
        %v419 = vsel %vm418, %v415, %v417
        %v420 = vsel %vm418, %v417, %v415
        %421 = vrot.lane.b32.xlu0 %v382, 113
        %v422 = vpop.permute.xlu0 %421
        %423 = vrot.lane.b32.xlu0 %v383, 113
        %v424 = vpop.permute.xlu0 %423
        %vm425 = vcmp.lt.s32.totalorder %v389, 113
        %v426 = vsel %vm425, %v422, %v424
        %v427 = vsel %vm425, %v424, %v422
        %428 = vrot.lane.b32.xlu0 %v382, 112
        %v429 = vpop.permute.xlu0 %428
        %430 = vrot.lane.b32.xlu0 %v383, 112
        %v431 = vpop.permute.xlu0 %430
        %vm432 = vcmp.lt.s32.totalorder %v389, 112
        %v433 = vsel %vm432, %v429, %v431
        %v434 = vsel %vm432, %v431, %v429
        %435 = vrot.lane.b32.xlu0 %v382, 111
        %v436 = vpop.permute.xlu0 %435
        %437 = vrot.lane.b32.xlu0 %v383, 111
        %v438 = vpop.permute.xlu0 %437
        %vm439 = vcmp.lt.s32.totalorder %v389, 111
        %v440 = vsel %vm439, %v436, %v438
        %v441 = vsel %vm439, %v438, %v436
        %v442 = vmul.f32 %v392, %v292
        %v443 = vmul.f32 %v391, %v293
        %v444 = vmul.f32 %v399, %v294
        %v445 = vmul.f32 %v398, %v295
        %v446 = vmul.f32 %v406, %v296
        %v447 = vmul.f32 %v405, %v297
        %v448 = vmul.f32 %v413, %v298
        %v449 = vmul.f32 %v412, %v299
        %v450 = vmul.f32 %v382, %v300
        %v451 = vmul.f32 %v383, %v301
        %v452 = vmul.f32 %v419, %v302
        %v453 = vmul.f32 %v420, %v303
        %v454 = vmul.f32 %v426, %v304
        %v455 = vmul.f32 %v427, %v305
        %v456 = vmul.f32 %v433, %v306
        %v457 = vmul.f32 %v434, %v307
        %v458 = vmul.f32 %v440, %v308
        %v459 = vmul.f32 %v441, %v309
        %v460 = vpack.c.bf16 %v444, %v442
        %v461 = vpack.c.bf16 %v445, %v443
        %v462 = vpack.c.bf16 %v448, %v446
        %v463 = vpack.c.bf16 %v449, %v447
        %v464 = vpack.c.bf16 %v452, %v450
        %v465 = vpack.c.bf16 %v453, %v451
        %v466 = vpack.c.bf16 %v456, %v454
        %v467 = vpack.c.bf16 %v457, %v455
        %v468 = vpack.c.bf16 %v458, %v458
        %v469 = vpack.c.bf16 %v459, %v459
        %471 = vset.pattern.permute.xlu0 0
        %472 = vperm.xlu0 %471, %v290
        %v473 = vpop.permute.xlu0 %472
        %476 = vset.pattern.permute.xlu0 0
        %477 = vperm.xlu0 %476, %v291
        %v478 = vpop.permute.xlu0 %477
        %v482 = vunpack.c.l.b16 %v287
        %v483 = vunpack.c.l.b16 %v288
        %v484 = vpack.c.b16 %v483, %v482
        %vm485 = vcmask 588800
        %v487 = vsel %vm485, %v484, 0
        %vm489 = vcmask 1043456
        %v491 = vsel %vm489, %v468, 0
        %v494 = vsel %vm489, %v469, 0
        %496 = vmatprep.subr.bf16.mxu0 %v461
        %497 = vmatpush1.bf16.msra.mxu0 %v460
        %498 = vmatprep.subr.bf16.mxu0 %v463
        %499 = vmatpush1.bf16.msra.mxu0 %v462
        %500 = vmatprep.subr.bf16.mxu0 %v465
        %501 = vmatpush1.bf16.msra.mxu0 %v464
        %502 = vmatprep.subr.bf16.mxu0 %v467
        %503 = vmatpush1.bf16.msra.mxu0 %v466
        %504 = vmatprep.subr.bf16.mxu0 %v494
        %505 = vmatpush1.bf16.msra.mxu0 %v491
        %506 = vmatprep.subr.bf16.mxu0 0
        %507 = vmatpush1.bf16.msra.mxu0 0
        %508 = vmatprep.subr.bf16.mxu0 0
        %509 = vmatpush1.bf16.msra.mxu0 0
        %510 = vmatprep.subr.bf16.mxu0 0
        %511 = vmatpush1.bf16.msra.mxu0 0
        %512 = vmatprep.subr.bf16.mxu0 0
        %513 = vmatpush1.bf16.msra.mxu0 0
        %514 = vmatprep.subr.bf16.mxu0 0
        %515 = vmatpush1.bf16.msra.mxu0 0
        %516 = vmatprep.subr.bf16.mxu0 0
        %517 = vmatpush1.bf16.msra.mxu0 0
        %518 = vmatprep.subr.bf16.mxu0 0
        %519 = vmatpush1.bf16.msra.mxu0 0
        %520 = vmatprep.subr.bf16.mxu0 0
        %521 = vmatpush1.bf16.msra.mxu0 0
        %522 = vmatprep.subr.bf16.mxu0 0
        %523 = vmatpush1.bf16.msra.mxu0 0
        %524 = vmatprep.subr.bf16.mxu0 0
        %525 = vmatpush1.bf16.msra.mxu0 0
        %526 = vmatprep.subr.bf16.mxu0 0
        %527 = vmatpush1.bf16.msra.mxu0 0
        %528 = vmatprep.mubr.bf16.mxu0 0
        %529 = vmatmul.mubr.bf16.gmra.mrb[0].mxu0 %v487
        %v530 = vpop.f32.mrb[0].mxu0
        %v531 = vadd.f32 %v473, %v530
        %v532 = vpop.f32.mrb[0].mxu0
        %v533 = vadd.f32 %v473, %v532
        %v534 = vpop.f32.mrb[0].mxu0
        %v535 = vadd.f32 %v478, %v534
        %v536 = vpop.f32.mrb[0].mxu0
        %v537 = vadd.f32 %v478, %v536
        %538 = vdwg.mxu0
        %v539 = vsub.f32 0.0, %v531
        %v540 = vsub.f32 0.0, %v533
        %v541 = vsub.f32 0.0, %v535
        %v542 = vsub.f32 0.0, %v537
        %v543 = vmul.f32 %v539, 1.442695
        %v544 = vpow.pop %v543
        %v545 = vmul.f32 %v540, 1.442695
        %v546 = vpow.pop %v545
        %v547 = vmul.f32 %v541, 1.442695
        %v548 = vpow.pop %v547
        %v549 = vmul.f32 %v542, 1.442695
        %v550 = vpow.pop %v549
        %v551 = vadd.f32 %v544, 1.0
        %v552 = vadd.f32 %v546, 1.0
        %v553 = vadd.f32 %v548, 1.0
        %v554 = vadd.f32 %v550, 1.0
        %v555 = vrcp.pop %v551
        %v556 = vrcp.pop %v552
        %v557 = vrcp.pop %v553
        %v558 = vrcp.pop %v554
        %v559 = vmul.f32 %v531, %v555
        %v560 = vmul.f32 %v533, %v556
        %v561 = vmul.f32 %v535, %v557
        %v562 = vmul.f32 %v537, %v558
        %v563 = vunpack.c.l.bf16 %v310
        %v564 = vunpack.c.h.bf16 %v310
        %v565 = vunpack.c.l.bf16 %v311
        %v566 = vunpack.c.h.bf16 %v311
        %v567 = vadd.f32 %v559, %v563
        %v568 = vadd.f32 %v560, %v564
        %v569 = vadd.f32 %v561, %v565
        %v570 = vadd.f32 %v562, %v566
        %571 = vst [vmem:[%s284] sm:$0xff] %v567
        %572 = vst [vmem:[%s284 + $0x8] sm:$0xff] %v568
        %573 = vst [vmem:[%s284 + $0x10] sm:$0xff] %v569
        %574 = vst [vmem:[%s284 + $0x18] sm:$0xff] %v570
        %s575 = sand.u32 %s163, 1
        %s576 = scalar_lea.sflag [#allocation4], %s575
        %s577 = sand.u32 %s163, 1
        %s578 = smul.addr %s577, 32
        %s579 = scalar_lea.vmem [#allocation7], %s578
        // Predicated region
        $region53: #{tpu_custom_call.1} parent=43 // pred_check
          %p580 = pneg %p173
        $region54: #{tpu_custom_call.1} parent=43 // pred_check_branch
          %582 = sbr.rel (%p580) target = $region56
        $region55: #{tpu_custom_call.1} parent=43 // pred_region
          %s584 = ssub.s32 512, 512
          %585 = vsyncadd %s576, %s584
          %s586 = smul.addr %s24, 4
          %s587 = smul.addr %s586, 128
          %s588 = scalar_lea.hbm %s6, %s587
          %s589 = sshll.u32 %s579, 4
          %s590 = int_to_ptr.vmem [resolvable:$true] %s589
          %595 = dma.vmem_to_hbm [thread:$0]  %s590, 512, %s588, %s576, 256, 256, 16
        $region56: #{tpu_custom_call.1} parent=43 // pred_fallthru
          _
      $region44: #{tpu_custom_call.1} parent=5 // pred_fallthru
        _
      %p596 = scmp.le.s32.totalorder 2, %s19
      // Predicated region
      $region57: #{tpu_custom_call.1} parent=5 // pred_check
        %p597 = pneg %p596
      $region58: #{tpu_custom_call.1} parent=5 // pred_check_branch
        %599 = sbr.rel (%p597) target = $region60
      $region59: #{tpu_custom_call.1} parent=5 // pred_region
        %s600 = ssub.s32 %s19, 2
        // Predicated region
        $region61: #{tpu_custom_call.1} parent=59 // pred_check
          %p601 = pneg %p179
        $region62: #{tpu_custom_call.1} parent=59 // pred_check_branch
          %603 = sbr.rel (%p601) target = $region64
        $region63: #{tpu_custom_call.1} parent=59 // pred_region
          %s604 = sand.u32 %s164, 1
          %s605 = scalar_lea.sflag [#allocation4], %s604
          %s606 = sand.u32 %s164, 1
          %s607 = smul.addr %s606, 32
          %s608 = scalar_lea.vmem [#allocation7], %s607
          %609 = dma.done %s605, 512
        $region64: #{tpu_custom_call.1} parent=59 // pred_fallthru
          _
      $region60: #{tpu_custom_call.1} parent=5 // pred_fallthru
        _
    $region6: #{tpu_custom_call.1} parent=1 // loop_footer
      %s23 = sadd.s32 1, %s19
    $region7: #{tpu_custom_call.1} parent=1 // loop_footer_branch
      %18 = sbr.rel target = $region3
    $region8: #{tpu_custom_call.1} parent=1 // loop_exit
      _
    %610 = vsyncpa [#allocation3], 1
    %s611 = scalar_lea.sflag [#allocation3], 1
    %612 = vsyncpa %s611, 1
    %613 = vsyncpa [#allocation6], 1
    %614 = vsyncpa [#allocation4], 1
    %s615 = scalar_lea.sflag [#allocation4], 1
    %616 = vsyncpa %s615, 1

</llo_original>
